<compile_context>
chip_gen: v7x
topology: tpu7x:2x2x1
jax: 0.10.0
libtpu: 0.0.40
codegen_flags: <defaults>
</compile_context>

<pallas_src>
import jax
import jax.numpy as jnp
from jax.experimental import pallas as pl
from jax.experimental.pallas import tpu as pltpu


def mlp_kernel(x_ref, w1_ref, b1_ref, w2_ref, b2_ref, o_ref):
    # x_ref:  (TN, F)    f32 tile of node features (cast to bf16 on-chip)
    # w1_ref: (F, H)     bf16 first-layer weight (resident, single-buffered)
    # b1_ref: (1, H)     f32
    # w2_ref: (H, Cp)    bf16 second-layer weight, classes padded to 128 lanes
    # b2_ref: (1, Cp)    f32
    # o_ref:  (TN, Cp)   bf16 logits tile (lane-dense, unmasked vst)
    x = x_ref[...].astype(jnp.bfloat16)
    h = jnp.dot(x, w1_ref[...], preferred_element_type=jnp.float32)
    h = jnp.maximum(h + b1_ref[...], 0.0)                 # bias + ReLU in f32
    out = jnp.dot(h.astype(jnp.bfloat16), w2_ref[...],
                  preferred_element_type=jnp.float32)
    o_ref[...] = (out + b2_ref[...]).astype(o_ref.dtype)


def prepare_net_params(w1, b1, w2, b2):
    """One-time weight prep (bf16 cast, class-dim pad). Cache the result and
    reuse it across forward calls — this never runs on the per-call path."""
    f, h = w1.shape
    c = w2.shape[1]
    c_pad = pl.cdiv(c, 128) * 128                         # lane-dense classes
    w1b = w1.astype(jnp.bfloat16)
    w2b = jnp.pad(w2, ((0, 0), (0, c_pad - c))).astype(jnp.bfloat16)
    b1f = b1.astype(jnp.float32).reshape(1, h)
    b2f = jnp.pad(b2.astype(jnp.float32).reshape(1, c),
                  ((0, 0), (0, c_pad - c)))
    # TODO(synk): at production F/H, optionally quantize W1/W2 here (int8 on
    # v5e/v6e, fp8 on v7x) with per-channel f32 scales applied on the f32
    # accumulator.
    return (w1b, b1f, w2b, b2f, c)


def net_forward(features, params, *, tile_n_hint=512):
    """Pallas implementation of NET.forward(features)."""
    w1b, b1f, w2b, b2f, c = params
    n, f = features.shape
    h = w1b.shape[1]
    c_pad = w2b.shape[1]

    # Tile/grid selection: number of tiles first (>=2 so pipelining and the
    # v7x megacore split actually engage; even count so both TCs get work),
    # then a balanced, 8-aligned tile size.  No wrapper-side row padding —
    # Pallas handles the partial last block.
    g = max(2, pl.cdiv(n, int(tile_n_hint)))
    g = ((g + 1) // 2) * 2
    tile_n = ((pl.cdiv(n, g) + 7) // 8) * 8
    grid = (pl.cdiv(n, tile_n),)

    # VMEM budget from actual buffer usage (+2x headroom), capped well under
    # v7x's 64 MiB physical VMEM.
    vmem_bytes = (
        2 * tile_n * f * 4           # feature tile, double-buffered, f32
        + 2 * tile_n * c_pad * 2     # output tile, double-buffered, bf16
        + f * h * 2 + h * c_pad * 2  # resident bf16 weights, single-buffered
        + (h + c_pad) * 4            # f32 biases
    )
    vmem_limit = int(min(max(4 << 20, 2 * vmem_bytes), 48 << 20))

    cost = pl.CostEstimate(
        flops=2 * n * (f * h + h * c_pad),
        transcendentals=0,
        bytes_accessed=(n * f * 4            # f32 feature stream in
                        + n * c_pad * 2      # bf16 logits out
                        + f * h * 2 + h * c_pad * 2   # bf16 weights
                        + (h + c_pad) * 4),  # f32 biases
    )

    out = pl.pallas_call(
        mlp_kernel,
        out_shape=jax.ShapeDtypeStruct((n, c_pad), jnp.bfloat16),
        grid_spec=pl.GridSpec(
            grid=grid,
            in_specs=[
                pl.BlockSpec((tile_n, f), lambda i: (i, 0)),   # feature tile
                pl.BlockSpec((f, h), lambda i: (0, 0),
                             pipeline_mode=pl.Buffered(1)),    # W1 resident
                pl.BlockSpec((1, h), lambda i: (0, 0),
                             pipeline_mode=pl.Buffered(1)),    # b1
                pl.BlockSpec((h, c_pad), lambda i: (0, 0),
                             pipeline_mode=pl.Buffered(1)),    # W2 resident
                pl.BlockSpec((1, c_pad), lambda i: (0, 0),
                             pipeline_mode=pl.Buffered(1)),    # b2
            ],
            out_specs=pl.BlockSpec((tile_n, c_pad), lambda i: (i, 0)),
        ),
        compiler_params=pltpu.CompilerParams(
            dimension_semantics=("parallel",),
            vmem_limit_bytes=vmem_limit,
        ),
        cost_estimate=cost,
    )(features, w1b, b1f, w2b, b2f)

    # Strip the lane padding on the class axis; return f32 logits.
    return out[:, :c].astype(jnp.float32)
    # TODO(synk): for production-scale F/H on v7x (64 MiB VMEM), add a K-
    # reduction grid axis (marked "arbitrary", reduction last) with an f32
    # VMEM accumulator scratch and stream W1 in K-slabs instead of keeping it
    # fully resident.


if __name__ == "__main__":
    # Small, module-consistent shapes: N nodes, F input features,
    # H hidden units, C classes.  N deliberately NOT a multiple of 8*tiles to
    # exercise the partial-last-block path.
    N, F, H, C = 300, 32, 64, 16

    key = jax.random.PRNGKey(0)
    k_x, k_w1, k_b1, k_w2, k_b2 = jax.random.split(key, 5)

    features = jax.random.normal(k_x, (N, F), dtype=jnp.float32)
    # Deterministic parameter init (synthetic; no checkpoint load).
    w1 = jax.random.normal(k_w1, (F, H), dtype=jnp.float32) * 0.1
    b1 = jax.random.normal(k_b1, (1, H), dtype=jnp.float32) * 0.01
    w2 = jax.random.normal(k_w2, (H, C), dtype=jnp.float32) * 0.1
    b2 = jax.random.normal(k_b2, (1, C), dtype=jnp.float32) * 0.01

    params = prepare_net_params(w1, b1, w2, b2)   # one-time weight prep
    out = net_forward(features, params)
    out = jax.block_until_ready(out)

    # Pure-JAX f32 reference of the forward semantics (kernel streams bf16
    # through the MXU with f32 accumulation and stores bf16 logits, so
    # compare with a bf16-appropriate tolerance).
    ref = jnp.maximum(features @ w1 + b1, 0.0) @ w2 + b2
    assert out.shape == (N, C)
    assert jnp.allclose(out, ref, atol=5e-2, rtol=5e-2), \
        float(jnp.max(jnp.abs(out - ref)))

    # TODO(synk): observe()/compute_gradient() (CE loss, MAS/EWC quadratic
    # penalty, Adam step) are training-time host logic, not part of forward.
    print("KERNEL_OK")
</pallas_src>

<mosaic_0001>
module attributes {stable_mosaic.version = 11 : i64} {
  func.func @mlp_kernel(%arg0: i32, %arg1: memref<152x32xf32, #tpu.memory_space<vmem>>, %arg2: memref<32x64xbf16, #tpu.memory_space<vmem>>, %arg3: memref<1x64xf32, #tpu.memory_space<vmem>>, %arg4: memref<64x128xbf16, #tpu.memory_space<vmem>>, %arg5: memref<1x128xf32, #tpu.memory_space<vmem>>, %arg6: memref<152x128xbf16, #tpu.memory_space<vmem>>) attributes {dimension_semantics = [#tpu.dimension_semantics<parallel>], iteration_bounds = array<i64: 2>, scalar_prefetch = 0 : i64, scratch_operands = 0 : i64, tpu.core_type = #tpu.core_type<tc>, window_params = [{transform_indices = @transform_0, window_bounds = array<i64: 152, 32>}, {pipeline_mode = #tpu.pipeline_mode<synchronous>, transform_indices = @transform_1, window_bounds = array<i64: 32, 64>}, {pipeline_mode = #tpu.pipeline_mode<synchronous>, transform_indices = @transform_2, window_bounds = array<i64: 1, 64>}, {pipeline_mode = #tpu.pipeline_mode<synchronous>, transform_indices = @transform_3, window_bounds = array<i64: 64, 128>}, {pipeline_mode = #tpu.pipeline_mode<synchronous>, transform_indices = @transform_4, window_bounds = array<i64: 1, 128>}, {transform_indices = @transform_5, window_bounds = array<i64: 152, 128>}]} {
    %c0 = arith.constant 0 : index
    %c0_0 = arith.constant 0 : index
    %0 = vector.load %arg1[%c0, %c0_0] : memref<152x32xf32, #tpu.memory_space<vmem>>, vector<152x32xf32>
    %1 = arith.truncf %0 : vector<152x32xf32> to vector<152x32xbf16>
    %c0_1 = arith.constant 0 : index
    %c0_2 = arith.constant 0 : index
    %2 = vector.load %arg2[%c0_1, %c0_2] : memref<32x64xbf16, #tpu.memory_space<vmem>>, vector<32x64xbf16>
    %cst = arith.constant dense<0.000000e+00> : vector<152x64xf32>
    %3 = tpu.matmul %1, %2, %cst {dimension_numbers = #tpu.dot_dimension_numbers<[1], [0], [0], [1], [0, 0, 1, 1], [], []>} : vector<152x32xbf16>, vector<32x64xbf16>, vector<152x64xf32> -> vector<152x64xf32>
    %c0_3 = arith.constant 0 : index
    %c0_4 = arith.constant 0 : index
    %4 = vector.load %arg3[%c0_3, %c0_4] : memref<1x64xf32, #tpu.memory_space<vmem>>, vector<1x64xf32>
    %5 = vector.broadcast %4 : vector<1x64xf32> to vector<152x64xf32>
    %6 = arith.addf %3, %5 : vector<152x64xf32>
    %cst_5 = arith.constant 0.000000e+00 : f32
    %7 = vector.broadcast %cst_5 : f32 to vector<152x64xf32>
    %8 = arith.maximumf %6, %7 : vector<152x64xf32>
    %9 = arith.truncf %8 : vector<152x64xf32> to vector<152x64xbf16>
    %c0_6 = arith.constant 0 : index
    %c0_7 = arith.constant 0 : index
    %10 = vector.load %arg4[%c0_6, %c0_7] : memref<64x128xbf16, #tpu.memory_space<vmem>>, vector<64x128xbf16>
    %cst_8 = arith.constant dense<0.000000e+00> : vector<152x128xf32>
    %11 = tpu.matmul %9, %10, %cst_8 {dimension_numbers = #tpu.dot_dimension_numbers<[1], [0], [0], [1], [0, 0, 1, 1], [], []>} : vector<152x64xbf16>, vector<64x128xbf16>, vector<152x128xf32> -> vector<152x128xf32>
    %c0_9 = arith.constant 0 : index
    %c0_10 = arith.constant 0 : index
    %12 = vector.load %arg5[%c0_9, %c0_10] : memref<1x128xf32, #tpu.memory_space<vmem>>, vector<1x128xf32>
    %13 = vector.broadcast %12 : vector<1x128xf32> to vector<152x128xf32>
    %14 = arith.addf %11, %13 : vector<152x128xf32>
    %15 = arith.truncf %14 : vector<152x128xf32> to vector<152x128xbf16>
    %c0_11 = arith.constant 0 : index
    %c0_12 = arith.constant 0 : index
    %16 = vector.load %arg6[%c0_11, %c0_12] : memref<152x128xbf16, #tpu.memory_space<vmem>>, vector<152x128xbf16>
    tpu.vector_store %arg6[%c0_11, %c0_12], %15 {strides = array<i32>} : memref<152x128xbf16, #tpu.memory_space<vmem>>, vector<152x128xbf16>,
    return
  }
  func.func @transform_0(%arg0: i32) -> (i32, i32) {
    %c0_i32 = arith.constant 0 : i32
    %c0_i32_0 = arith.constant 0 : i32
    return %arg0, %c0_i32 : i32, i32
  }
  func.func @transform_1(%arg0: i32) -> (i32, i32) {
    %c0_i32 = arith.constant 0 : i32
    %c0_i32_0 = arith.constant 0 : i32
    %c0_i32_1 = arith.constant 0 : i32
    return %c0_i32, %c0_i32_0 : i32, i32
  }
  func.func @transform_2(%arg0: i32) -> (i32, i32) {
    %c0_i32 = arith.constant 0 : i32
    %c0_i32_0 = arith.constant 0 : i32
    %c0_i32_1 = arith.constant 0 : i32
    return %c0_i32, %c0_i32_0 : i32, i32
  }
  func.func @transform_3(%arg0: i32) -> (i32, i32) {
    %c0_i32 = arith.constant 0 : i32
    %c0_i32_0 = arith.constant 0 : i32
    %c0_i32_1 = arith.constant 0 : i32
    return %c0_i32, %c0_i32_0 : i32, i32
  }
  func.func @transform_4(%arg0: i32) -> (i32, i32) {
    %c0_i32 = arith.constant 0 : i32
    %c0_i32_0 = arith.constant 0 : i32
    %c0_i32_1 = arith.constant 0 : i32
    return %c0_i32, %c0_i32_0 : i32, i32
  }
  func.func @transform_5(%arg0: i32) -> (i32, i32) {
    %c0_i32 = arith.constant 0 : i32
    %c0_i32_0 = arith.constant 0 : i32
    return %arg0, %c0_i32 : i32, i32
  }
}

</mosaic_0001>

<llo_original>
// kernel: tpu_custom_call.1
$region0: #{tpu_custom_call.1}
  #allocation0 [shape = 'u32[]', space=smem, size = 0x4, offset = 0x4, fixed_abs, tag = 'smem constant byte address 0x4 - core index']
  #allocation1 [shape = 'u32[144,128]{1,0:T(1,128)}', space=vmem, size = 0x12000, scoped, tag = 'internal scratch']
  %s0 = inlined_call_operand.vmem [shape: f32[300,32], index: 0, kind: input, shape index: {}]
  %s1 = inlined_call_operand.vmem [shape: bf16[32,64], index: 1, kind: input, shape index: {}]
  %s2 = inlined_call_operand.vmem [shape: f32[1,64], index: 2, kind: input, shape index: {}]
  %s3 = inlined_call_operand.vmem [shape: bf16[64,128], index: 3, kind: input, shape index: {}]
  %s4 = inlined_call_operand.vmem [shape: f32[1,128], index: 4, kind: input, shape index: {}]
  %s5 = inlined_call_operand.hbm [shape: bf16[300,128], index: 5, kind: output, shape index: {}]
  %s6 = sld [smem:[#allocation0]]
  $region53: #{tpu_custom_call.1} parent=0
    _
  %s8 = ssub.s32 1, %s6
  %s9 = scalar_select 0, %s8, %s6
  $region1: #{tpu_custom_call.1} parent=0
    #allocation2 [shape = 'u8[77824]{0}', space=vmem, size = 0x13000, scoped, tag = 'output window, operand 0']
    #allocation3 [shape = 's32[2]{0}', space=sflag, size = 0x8, scoped, tag = 'scoped memory for tpu_custom_call.1']
    %10 = vsyncpa [#allocation3], 0
    %s11 = scalar_lea.sflag [#allocation3], 1
    %12 = vsyncpa %s11, 0
    loop: start=0, step=1, limit=4
    $region2: #{tpu_custom_call.1} parent=1 // loop_pre_header
      _
    $region3: #{tpu_custom_call.1} parent=1 // loop_header
      %s14 = sphi 0, %s18
      %p15 = scmp.ge.s32.totalorder %s14, 4
      %s24 = sphi 0, %s26
      %s27 = sphi 0, %s24
      %s28 = sphi 0, %s27
      %s44 = sphi 0, %s28
      %s48 = sphi 0, %s48
      %s50 = sphi 0, %s48
      %s51 = sphi 0, %s50
      %s65 = sphi 0, %s51
      %s69 = sphi 0, %s69
      %s71 = sphi 0, %s69
      %s72 = sphi 0, %s71
      %s86 = sphi 0, %s72
      %s90 = sphi 0, %s90
      %s92 = sphi 0, %s90
      %s93 = sphi 0, %s92
      %s107 = sphi 0, %s93
      %s111 = sphi 0, %s111
      %s113 = sphi 0, %s111
      %s114 = sphi 0, %s113
      %s128 = sphi 0, %s114
      %s134 = sphi 0, %s136
      %s137 = sphi 0, %s134
      %s138 = sphi 0, %s137
      %s154 = sphi 0, %s138
    $region4: #{tpu_custom_call.1} parent=1 // loop_header_branch
      %17 = sbr.rel (%p15) target = $region8
    $region5: #{tpu_custom_call.1} parent=1 // loop_body
      %s19 = ssub.s32 %s14, 1
      %s20 = ssub.s32 %s14, 2
      %s21 = sadd.s32 %s14, 1
      %s22 = ssub.s32 %s14, %s21
      %p23 = scmp.eq.s32.totalorder %s22, 0
      %s25 = sadd.s32 %s24, 1
      %s26 = scalar_select %p23, %s24, %s25
      %p29 = pneg %p23
      %p30 = scmp.eq.s32.totalorder %s14, 1
      %p31 = por %p29, %p30
      %p32 = scmp.ne.s32.totalorder %s24, %s27
      %p33 = scmp.eq.s32.totalorder %s14, 0
      %p34 = por %p32, %p33
      %p35 = scmp.ne.s32.totalorder %s24, %s27
      %p36 = scmp.eq.s32.totalorder %s19, 1
      %p37 = por %p35, %p36
      %p38 = scmp.ne.s32.totalorder %s27, %s28
      %p39 = scmp.eq.s32.totalorder %s19, 0
      %p40 = por %p38, %p39
      %p41 = scmp.ne.s32.totalorder %s27, %s28
      %p42 = scmp.eq.s32.totalorder %s20, 1
      %p43 = por %p41, %p42
      %p45 = scmp.ne.s32.totalorder %s28, %s44
      %p46 = scmp.eq.s32.totalorder %s20, 0
      %p47 = por %p45, %p46
      %s49 = sadd.s32 %s48, 1
      %p52 = scmp.eq.s32.totalorder %s14, 1
      %p53 = scmp.ne.s32.totalorder %s48, %s50
      %p54 = scmp.eq.s32.totalorder %s14, 0
      %p55 = por %p53, %p54
      %p56 = scmp.ne.s32.totalorder %s48, %s50
      %p57 = scmp.eq.s32.totalorder %s19, 1
      %p58 = por %p56, %p57
      %p59 = scmp.ne.s32.totalorder %s50, %s51
      %p60 = scmp.eq.s32.totalorder %s19, 0
      %p61 = por %p59, %p60
      %p62 = scmp.ne.s32.totalorder %s50, %s51
      %p63 = scmp.eq.s32.totalorder %s20, 1
      %p64 = por %p62, %p63
      %p66 = scmp.ne.s32.totalorder %s51, %s65
      %p67 = scmp.eq.s32.totalorder %s20, 0
      %p68 = por %p66, %p67
      %s70 = sadd.s32 %s69, 1
      %p73 = scmp.eq.s32.totalorder %s14, 1
      %p74 = scmp.ne.s32.totalorder %s69, %s71
      %p75 = scmp.eq.s32.totalorder %s14, 0
      %p76 = por %p74, %p75
      %p77 = scmp.ne.s32.totalorder %s69, %s71
      %p78 = scmp.eq.s32.totalorder %s19, 1
      %p79 = por %p77, %p78
      %p80 = scmp.ne.s32.totalorder %s71, %s72
      %p81 = scmp.eq.s32.totalorder %s19, 0
      %p82 = por %p80, %p81
      %p83 = scmp.ne.s32.totalorder %s71, %s72
      %p84 = scmp.eq.s32.totalorder %s20, 1
      %p85 = por %p83, %p84
      %p87 = scmp.ne.s32.totalorder %s72, %s86
      %p88 = scmp.eq.s32.totalorder %s20, 0
      %p89 = por %p87, %p88
      %s91 = sadd.s32 %s90, 1
      %p94 = scmp.eq.s32.totalorder %s14, 1
      %p95 = scmp.ne.s32.totalorder %s90, %s92
      %p96 = scmp.eq.s32.totalorder %s14, 0
      %p97 = por %p95, %p96
      %p98 = scmp.ne.s32.totalorder %s90, %s92
      %p99 = scmp.eq.s32.totalorder %s19, 1
      %p100 = por %p98, %p99
      %p101 = scmp.ne.s32.totalorder %s92, %s93
      %p102 = scmp.eq.s32.totalorder %s19, 0
      %p103 = por %p101, %p102
      %p104 = scmp.ne.s32.totalorder %s92, %s93
      %p105 = scmp.eq.s32.totalorder %s20, 1
      %p106 = por %p104, %p105
      %p108 = scmp.ne.s32.totalorder %s93, %s107
      %p109 = scmp.eq.s32.totalorder %s20, 0
      %p110 = por %p108, %p109
      %s112 = sadd.s32 %s111, 1
      %p115 = scmp.eq.s32.totalorder %s14, 1
      %p116 = scmp.ne.s32.totalorder %s111, %s113
      %p117 = scmp.eq.s32.totalorder %s14, 0
      %p118 = por %p116, %p117
      %p119 = scmp.ne.s32.totalorder %s111, %s113
      %p120 = scmp.eq.s32.totalorder %s19, 1
      %p121 = por %p119, %p120
      %p122 = scmp.ne.s32.totalorder %s113, %s114
      %p123 = scmp.eq.s32.totalorder %s19, 0
      %p124 = por %p122, %p123
      %p125 = scmp.ne.s32.totalorder %s113, %s114
      %p126 = scmp.eq.s32.totalorder %s20, 1
      %p127 = por %p125, %p126
      %p129 = scmp.ne.s32.totalorder %s114, %s128
      %p130 = scmp.eq.s32.totalorder %s20, 0
      %p131 = por %p129, %p130
      %s132 = ssub.s32 %s14, %s21
      %p133 = scmp.eq.s32.totalorder %s132, 0
      %s135 = sadd.s32 %s134, 1
      %s136 = scalar_select %p133, %s134, %s135
      %p139 = pneg %p133
      %p140 = scmp.eq.s32.totalorder %s14, 1
      %p141 = por %p139, %p140
      %p142 = scmp.ne.s32.totalorder %s134, %s137
      %p143 = scmp.eq.s32.totalorder %s14, 0
      %p144 = por %p142, %p143
      %p145 = scmp.ne.s32.totalorder %s134, %s137
      %p146 = scmp.eq.s32.totalorder %s19, 1
      %p147 = por %p145, %p146
      %p148 = scmp.ne.s32.totalorder %s137, %s138
      %p149 = scmp.eq.s32.totalorder %s19, 0
      %p150 = por %p148, %p149
      %p151 = scmp.ne.s32.totalorder %s137, %s138
      %p152 = scmp.eq.s32.totalorder %s20, 1
      %p153 = por %p151, %p152
      %p155 = scmp.ne.s32.totalorder %s138, %s154
      %p156 = scmp.eq.s32.totalorder %s20, 0
      %p157 = por %p155, %p156
      %p158 = scmp.le.s32.totalorder 1, %s14
      %p159 = scmp.lt.s32.totalorder %s14, 3
      %p160 = pnand %p158, %p159
      %p161 = pneg %p160
      // Predicated region
      $region9: #{tpu_custom_call.1} parent=5 // pred_check
        _
      $region10: #{tpu_custom_call.1} parent=5 // pred_check_branch
        %163 = sbr.rel (%p160) target = $region12
      $region11: #{tpu_custom_call.1} parent=5 // pred_region
        %s164 = ssub.s32 %s14, 1
        // Predicated region
        $region13: #{tpu_custom_call.1} parent=11 // pred_check
          %p165 = pneg %p61
        $region14: #{tpu_custom_call.1} parent=11 // pred_check_branch
          %167 = sbr.rel (%p165) target = $region16
        $region15: #{tpu_custom_call.1} parent=11 // pred_region
          _
        $region16: #{tpu_custom_call.1} parent=11 // pred_fallthru
          _
        // Predicated region
        $region17: #{tpu_custom_call.1} parent=11 // pred_check
          %p168 = pneg %p82
        $region18: #{tpu_custom_call.1} parent=11 // pred_check_branch
          %170 = sbr.rel (%p168) target = $region20
        $region19: #{tpu_custom_call.1} parent=11 // pred_region
          _
        $region20: #{tpu_custom_call.1} parent=11 // pred_fallthru
          _
        // Predicated region
        $region21: #{tpu_custom_call.1} parent=11 // pred_check
          %p171 = pneg %p103
        $region22: #{tpu_custom_call.1} parent=11 // pred_check_branch
          %173 = sbr.rel (%p171) target = $region24
        $region23: #{tpu_custom_call.1} parent=11 // pred_region
          _
        $region24: #{tpu_custom_call.1} parent=11 // pred_fallthru
          _
        // Predicated region
        $region25: #{tpu_custom_call.1} parent=11 // pred_check
          %p174 = pneg %p124
        $region26: #{tpu_custom_call.1} parent=11 // pred_check_branch
          %176 = sbr.rel (%p174) target = $region28
        $region27: #{tpu_custom_call.1} parent=11 // pred_region
          _
        $region28: #{tpu_custom_call.1} parent=11 // pred_fallthru
          _
      $region12: #{tpu_custom_call.1} parent=5 // pred_fallthru
        _
      %p177 = scmp.lt.s32.totalorder %s14, 2
      // Predicated region
      $region29: #{tpu_custom_call.1} parent=5 // pred_check
        %p178 = pneg %p177
      $region30: #{tpu_custom_call.1} parent=5 // pred_check_branch
        %180 = sbr.rel (%p178) target = $region32
      $region31: #{tpu_custom_call.1} parent=5 // pred_region
        // Predicated region
        $region33: #{tpu_custom_call.1} parent=31 // pred_check
          %p181 = pneg %p34
        $region34: #{tpu_custom_call.1} parent=31 // pred_check_branch
          %183 = sbr.rel (%p181) target = $region36
        $region35: #{tpu_custom_call.1} parent=31 // pred_region
          %s184 = smul.u32 19, %s14
          %p185 = scmp.lt.s32.totalorder %s184, 37
          %s186 = scalar_select %p185, %s184, 37
          %s187 = smul.addr %s186, 8
          %s188 = scalar_lea.vmem %s0, %s187
          %s189 = smul.u32 19, %s14
        $region36: #{tpu_custom_call.1} parent=31 // pred_fallthru
          _
      $region32: #{tpu_custom_call.1} parent=5 // pred_fallthru
        _
      %p190 = scmp.le.s32.totalorder 1, %s14
      %p191 = scmp.lt.s32.totalorder %s14, 3
      %p192 = pnand %p190, %p191
      %p193 = pneg %p192
      // Predicated region
      $region37: #{tpu_custom_call.1} parent=5 // pred_check
        _
      $region38: #{tpu_custom_call.1} parent=5 // pred_check_branch
        %195 = sbr.rel (%p192) target = $region40
      $region39: #{tpu_custom_call.1} parent=5 // pred_region
        %s196 = ssub.s32 %s14, 1
        %s197 = smul.u32 19, %s19
        %p198 = scmp.lt.s32.totalorder %s197, 37
        %s199 = scalar_select %p198, %s197, 37
        %s200 = smul.addr %s199, 8
        %s201 = scalar_lea.vmem %s0, %s200
        %p202 = pneg %p40
        %p203 = pneg %p37
        %p204 = pneg %p61
        %p205 = pneg %p58
        %p206 = pneg %p82
        %p207 = pneg %p79
        %p208 = pneg %p103
        %p209 = pneg %p100
        %p210 = pneg %p124
        %p211 = pneg %p121
        %p212 = pneg %p150
        %p213 = pneg %p147
        %s214 = sand.u32 %s137, 1
        %s215 = scalar_lea.sflag [#allocation3], %s214
        %s216 = sand.u32 %s137, 1
        %s217 = smul.addr %s216, 76
        %s218 = scalar_lea.vmem [#allocation2], %s217
        %s219 = smul.u32 19, %s19
        %p220 = scmp.lt.s32.totalorder %s219, 37
        %s221 = scalar_select %p220, %s219, 37
        %s222 = smul.addr %s221, 8
        %s223 = scalar_lea.vmem %s0, %s222
        %s224 = smul.u32 19, %s19
        %s225 = smul.u32 19, %s19
        %v227 = vld [vmem:[%s223] sm:$0xff]
        %v228 = vld [vmem:[%s223 + $0x8] sm:$0xff]
        %v229 = vld [vmem:[%s223 + $0x10] sm:$0xff]
        %v230 = vld [vmem:[%s223 + $0x18] sm:$0xff]
        %v231 = vld [vmem:[%s223 + $0x20] sm:$0xff]
        %v232 = vld [vmem:[%s223 + $0x28] sm:$0xff]
        %v233 = vld [vmem:[%s223 + $0x30] sm:$0xff]
        %v234 = vld [vmem:[%s223 + $0x38] sm:$0xff]
        %v235 = vld [vmem:[%s223 + $0x40] sm:$0xff]
        %v236 = vld [vmem:[%s223 + $0x48] sm:$0xff]
        %v237 = vld [vmem:[%s223 + $0x50] sm:$0xff]
        %v238 = vld [vmem:[%s223 + $0x58] sm:$0xff]
        %v239 = vld [vmem:[%s223 + $0x60] sm:$0xff]
        %v240 = vld [vmem:[%s223 + $0x68] sm:$0xff]
        %v241 = vld [vmem:[%s223 + $0x70] sm:$0xff]
        %v242 = vld [vmem:[%s223 + $0x78] sm:$0xff]
        %v243 = vld [vmem:[%s223 + $0x80] sm:$0xff]
        %v244 = vld [vmem:[%s223 + $0x88] sm:$0xff]
        %v245 = vld [vmem:[%s223 + $0x90] sm:$0xff]
        %v246 = vpack.c.bf16 %v228, %v227
        %v247 = vpack.c.bf16 %v230, %v229
        %v248 = vpack.c.bf16 %v232, %v231
        %v249 = vpack.c.bf16 %v234, %v233
        %v250 = vpack.c.bf16 %v236, %v235
        %v251 = vpack.c.bf16 %v238, %v237
        %v252 = vpack.c.bf16 %v240, %v239
        %v253 = vpack.c.bf16 %v242, %v241
        %v254 = vpack.c.bf16 %v244, %v243
        %v255 = vpack.c.bf16 %v245, %v245
        %v256 = vld [vmem:[%s1] sm:$0xf]
        %v257 = vld [vmem:[%s1 + $0x4] sm:$0xf]
        %v258 = vld [vmem:[%s1 + $0x8] sm:$0xf]
        %v259 = vld [vmem:[%s1 + $0xc] sm:$0xf]
        %v260 = vld [vmem:[%s2] sm:$0x1]
        %v262 = vlaneseq
        %v263 = vshrl.u32 %v262, 7
        %v264 = vsub.s32 0, %v263
        %v265 = vrot.slane %v260, %v264
        %v271 = vunpack.c.l.b16 %v256
        %v272 = vunpack.c.l.b16 %v257
        %v273 = vunpack.c.l.b16 %v258
        %v274 = vunpack.c.l.b16 %v259
        %v275 = vpack.c.b16 %v272, %v271
        %v276 = vpack.c.b16 %v274, %v273
        %vm279 = vcmask 261120
        %v281 = vsel %vm279, %v246, 0
        %v284 = vsel %vm279, %v247, 0
        %v287 = vsel %vm279, %v248, 0
        %v290 = vsel %vm279, %v249, 0
        %v293 = vsel %vm279, %v250, 0
        %v296 = vsel %vm279, %v251, 0
        %v299 = vsel %vm279, %v252, 0
        %v302 = vsel %vm279, %v253, 0
        %v305 = vsel %vm279, %v254, 0
        %v308 = vsel %vm279, %v255, 0
        %310 = vmatprep.subr.bf16.mxu0 0
        %311 = vmatpush1.bf16.msra.mxu0 %v275
        %312 = vmatprep.subr.bf16.mxu0 0
        %313 = vmatpush1.bf16.msra.mxu0 %v276
        %314 = vmatprep.subr.bf16.mxu0 0
        %315 = vmatpush1.bf16.msra.mxu0 0
        %316 = vmatprep.subr.bf16.mxu0 0
        %317 = vmatpush1.bf16.msra.mxu0 0
        %318 = vmatprep.subr.bf16.mxu0 0
        %319 = vmatpush1.bf16.msra.mxu0 0
        %320 = vmatprep.subr.bf16.mxu0 0
        %321 = vmatpush1.bf16.msra.mxu0 0
        %322 = vmatprep.subr.bf16.mxu0 0
        %323 = vmatpush1.bf16.msra.mxu0 0
        %324 = vmatprep.subr.bf16.mxu0 0
        %325 = vmatpush1.bf16.msra.mxu0 0
        %326 = vmatprep.subr.bf16.mxu0 0
        %327 = vmatpush1.bf16.msra.mxu0 0
        %328 = vmatprep.subr.bf16.mxu0 0
        %329 = vmatpush1.bf16.msra.mxu0 0
        %330 = vmatprep.subr.bf16.mxu0 0
        %331 = vmatpush1.bf16.msra.mxu0 0
        %332 = vmatprep.subr.bf16.mxu0 0
        %333 = vmatpush1.bf16.msra.mxu0 0
        %334 = vmatprep.subr.bf16.mxu0 0
        %335 = vmatpush1.bf16.msra.mxu0 0
        %336 = vmatprep.subr.bf16.mxu0 0
        %337 = vmatpush1.bf16.msra.mxu0 0
        %338 = vmatprep.subr.bf16.mxu0 0
        %339 = vmatpush1.bf16.msra.mxu0 0
        %340 = vmatprep.subr.bf16.mxu0 0
        %341 = vmatpush1.bf16.msra.mxu0 0
        %342 = vmatprep.mubr.bf16.mxu0 0
        %343 = vmatmul.mubr.bf16.gmra.mrb[0].mxu0 %v281
        %v344 = vpop.f32.mrb[0].mxu0
        %v345 = vadd.f32 %v265, %v344
        %v346 = vpop.f32.mrb[0].mxu0
        %v347 = vpop.f32.mrb[0].mxu0
        %v348 = vadd.f32 %v265, %v347
        %v349 = vpop.f32.mrb[0].mxu0
        %350 = vmatprep.mubr.bf16.mxu0 0
        %351 = vmatmul.mubr.bf16.gmra.mrb[0].mxu0 %v284
        %v352 = vpop.f32.mrb[0].mxu0
        %v353 = vadd.f32 %v265, %v352
        %v354 = vpop.f32.mrb[0].mxu0
        %v355 = vpop.f32.mrb[0].mxu0
        %v356 = vadd.f32 %v265, %v355
        %v357 = vpop.f32.mrb[0].mxu0
        %358 = vmatprep.mubr.bf16.mxu0 0
        %359 = vmatmul.mubr.bf16.gmra.mrb[0].mxu0 %v287
        %v360 = vpop.f32.mrb[0].mxu0
        %v361 = vadd.f32 %v265, %v360
        %v362 = vpop.f32.mrb[0].mxu0
        %v363 = vpop.f32.mrb[0].mxu0
        %v364 = vadd.f32 %v265, %v363
        %v365 = vpop.f32.mrb[0].mxu0
        %366 = vmatprep.mubr.bf16.mxu0 0
        %367 = vmatmul.mubr.bf16.gmra.mrb[0].mxu0 %v290
        %v368 = vpop.f32.mrb[0].mxu0
        %v369 = vadd.f32 %v265, %v368
        %v370 = vpop.f32.mrb[0].mxu0
        %v371 = vpop.f32.mrb[0].mxu0
        %v372 = vadd.f32 %v265, %v371
        %v373 = vpop.f32.mrb[0].mxu0
        %374 = vmatprep.mubr.bf16.mxu0 0
        %375 = vmatmul.mubr.bf16.gmra.mrb[0].mxu0 %v293
        %v376 = vpop.f32.mrb[0].mxu0
        %v377 = vadd.f32 %v265, %v376
        %v378 = vpop.f32.mrb[0].mxu0
        %v379 = vpop.f32.mrb[0].mxu0
        %v380 = vadd.f32 %v265, %v379
        %v381 = vpop.f32.mrb[0].mxu0
        %382 = vmatprep.mubr.bf16.mxu0 0
        %383 = vmatmul.mubr.bf16.gmra.mrb[0].mxu0 %v296
        %v384 = vpop.f32.mrb[0].mxu0
        %v385 = vadd.f32 %v265, %v384
        %v386 = vpop.f32.mrb[0].mxu0
        %v387 = vpop.f32.mrb[0].mxu0
        %v388 = vadd.f32 %v265, %v387
        %v389 = vpop.f32.mrb[0].mxu0
        %390 = vmatprep.mubr.bf16.mxu0 0
        %391 = vmatmul.mubr.bf16.gmra.mrb[0].mxu0 %v299
        %v392 = vpop.f32.mrb[0].mxu0
        %v393 = vadd.f32 %v265, %v392
        %v394 = vpop.f32.mrb[0].mxu0
        %v395 = vpop.f32.mrb[0].mxu0
        %v396 = vadd.f32 %v265, %v395
        %v397 = vpop.f32.mrb[0].mxu0
        %398 = vmatprep.mubr.bf16.mxu0 0
        %399 = vmatmul.mubr.bf16.gmra.mrb[0].mxu0 %v302
        %v400 = vpop.f32.mrb[0].mxu0
        %v401 = vadd.f32 %v265, %v400
        %v402 = vpop.f32.mrb[0].mxu0
        %v403 = vpop.f32.mrb[0].mxu0
        %v404 = vadd.f32 %v265, %v403
        %v405 = vpop.f32.mrb[0].mxu0
        %406 = vmatprep.mubr.bf16.mxu0 0
        %407 = vmatmul.mubr.bf16.gmra.mrb[0].mxu0 %v305
        %v408 = vpop.f32.mrb[0].mxu0
        %v409 = vadd.f32 %v265, %v408
        %v410 = vpop.f32.mrb[0].mxu0
        %v411 = vpop.f32.mrb[0].mxu0
        %v412 = vadd.f32 %v265, %v411
        %v413 = vpop.f32.mrb[0].mxu0
        %414 = vmatprep.mubr.bf16.mxu0 0
        %415 = vmatmul.mubr.bf16.gmra.mrb[0].mxu0 %v308
        %v416 = vpop.f32.mrb[0].mxu0
        %v417 = vadd.f32 %v265, %v416
        %v418 = vpop.f32.mrb[0].mxu0
        %v419 = vpop.f32.mrb[0].mxu0
        %v420 = vpop.f32.mrb[0].mxu0
        %421 = vdwg.mxu0
        %v422 = vmax.f32 %v345, 0.0
        %v423 = vmax.f32 %v348, 0.0
        %v424 = vmax.f32 %v353, 0.0
        %v425 = vmax.f32 %v356, 0.0
        %v426 = vmax.f32 %v361, 0.0
        %v427 = vmax.f32 %v364, 0.0
        %v428 = vmax.f32 %v369, 0.0
        %v429 = vmax.f32 %v372, 0.0
        %v430 = vmax.f32 %v377, 0.0
        %v431 = vmax.f32 %v380, 0.0
        %v432 = vmax.f32 %v385, 0.0
        %v433 = vmax.f32 %v388, 0.0
        %v434 = vmax.f32 %v393, 0.0
        %v435 = vmax.f32 %v396, 0.0
        %v436 = vmax.f32 %v401, 0.0
        %v437 = vmax.f32 %v404, 0.0
        %v438 = vmax.f32 %v409, 0.0
        %v439 = vmax.f32 %v412, 0.0
        %v440 = vmax.f32 %v417, 0.0
        %v441 = vpack.c.bf16 %v423, %v422
        %v442 = vpack.c.bf16 %v425, %v424
        %v443 = vpack.c.bf16 %v427, %v426
        %v444 = vpack.c.bf16 %v429, %v428
        %v445 = vpack.c.bf16 %v431, %v430
        %v446 = vpack.c.bf16 %v433, %v432
        %v447 = vpack.c.bf16 %v435, %v434
        %v448 = vpack.c.bf16 %v437, %v436
        %v449 = vpack.c.bf16 %v439, %v438
        %v450 = vpack.c.bf16 %v440, %v440
        %v451 = vld [vmem:[%s3] sm:$0xf]
        %v452 = vld [vmem:[%s3 + $0x4] sm:$0xf]
        %v453 = vld [vmem:[%s3 + $0x8] sm:$0xf]
        %v454 = vld [vmem:[%s3 + $0xc] sm:$0xf]
        %v455 = vld [vmem:[%s3 + $0x10] sm:$0xf]
        %v456 = vld [vmem:[%s3 + $0x14] sm:$0xf]
        %v457 = vld [vmem:[%s3 + $0x18] sm:$0xf]
        %v458 = vld [vmem:[%s3 + $0x1c] sm:$0xf]
        %v459 = vld [vmem:[%s4] sm:$0x1]
        %v461 = vlaneseq
        %v462 = vshrl.u32 %v461, 7
        %v463 = vsub.s32 0, %v462
        %v464 = vrot.slane %v459, %v463
        %v474 = vunpack.c.l.b16 %v451
        %v475 = vunpack.c.l.b16 %v452
        %v476 = vunpack.c.l.b16 %v453
        %v477 = vunpack.c.l.b16 %v454
        %v478 = vunpack.c.l.b16 %v455
        %v479 = vunpack.c.l.b16 %v456
        %v480 = vunpack.c.l.b16 %v457
        %v481 = vunpack.c.l.b16 %v458
        %v482 = vpack.c.b16 %v475, %v474
        %v483 = vpack.c.b16 %v477, %v476
        %v484 = vpack.c.b16 %v479, %v478
        %v485 = vpack.c.b16 %v481, %v480
        %vm490 = vcmask 523264
        %v492 = vsel %vm490, %v441, 0
        %v495 = vsel %vm490, %v442, 0
        %v498 = vsel %vm490, %v443, 0
        %v501 = vsel %vm490, %v444, 0
        %v504 = vsel %vm490, %v445, 0
        %v507 = vsel %vm490, %v446, 0
        %v510 = vsel %vm490, %v447, 0
        %v513 = vsel %vm490, %v448, 0
        %v516 = vsel %vm490, %v449, 0
        %v519 = vsel %vm490, %v450, 0
        %521 = vmatprep.subr.bf16.mxu0 0
        %522 = vmatpush1.bf16.msra.mxu0 %v482
        %523 = vmatprep.subr.bf16.mxu0 0
        %524 = vmatpush1.bf16.msra.mxu0 %v483
        %525 = vmatprep.subr.bf16.mxu0 0
        %526 = vmatpush1.bf16.msra.mxu0 %v484
        %527 = vmatprep.subr.bf16.mxu0 0
        %528 = vmatpush1.bf16.msra.mxu0 %v485
        %529 = vmatprep.subr.bf16.mxu0 0
        %530 = vmatpush1.bf16.msra.mxu0 0
        %531 = vmatprep.subr.bf16.mxu0 0
        %532 = vmatpush1.bf16.msra.mxu0 0
        %533 = vmatprep.subr.bf16.mxu0 0
        %534 = vmatpush1.bf16.msra.mxu0 0
        %535 = vmatprep.subr.bf16.mxu0 0
        %536 = vmatpush1.bf16.msra.mxu0 0
        %537 = vmatprep.subr.bf16.mxu0 0
        %538 = vmatpush1.bf16.msra.mxu0 0
        %539 = vmatprep.subr.bf16.mxu0 0
        %540 = vmatpush1.bf16.msra.mxu0 0
        %541 = vmatprep.subr.bf16.mxu0 0
        %542 = vmatpush1.bf16.msra.mxu0 0
        %543 = vmatprep.subr.bf16.mxu0 0
        %544 = vmatpush1.bf16.msra.mxu0 0
        %545 = vmatprep.subr.bf16.mxu0 0
        %546 = vmatpush1.bf16.msra.mxu0 0
        %547 = vmatprep.subr.bf16.mxu0 0
        %548 = vmatpush1.bf16.msra.mxu0 0
        %549 = vmatprep.subr.bf16.mxu0 0
        %550 = vmatpush1.bf16.msra.mxu0 0
        %551 = vmatprep.subr.bf16.mxu0 0
        %552 = vmatpush1.bf16.msra.mxu0 0
        %553 = vmatprep.mubr.bf16.mxu0 0
        %554 = vmatmul.mubr.bf16.gmra.mrb[0].mxu0 %v492
        %v555 = vpop.f32.mrb[0].mxu0
        %v556 = vadd.f32 %v464, %v555
        %v557 = vpop.f32.mrb[0].mxu0
        %v558 = vpop.f32.mrb[0].mxu0
        %v559 = vadd.f32 %v464, %v558
        %v560 = vpop.f32.mrb[0].mxu0
        %561 = vmatprep.mubr.bf16.mxu0 0
        %562 = vmatmul.mubr.bf16.gmra.mrb[0].mxu0 %v495
        %v563 = vpop.f32.mrb[0].mxu0
        %v564 = vadd.f32 %v464, %v563
        %v565 = vpop.f32.mrb[0].mxu0
        %v566 = vpop.f32.mrb[0].mxu0
        %v567 = vadd.f32 %v464, %v566
        %v568 = vpop.f32.mrb[0].mxu0
        %569 = vmatprep.mubr.bf16.mxu0 0
        %570 = vmatmul.mubr.bf16.gmra.mrb[0].mxu0 %v498
        %v571 = vpop.f32.mrb[0].mxu0
        %v572 = vadd.f32 %v464, %v571
        %v573 = vpop.f32.mrb[0].mxu0
        %v574 = vpop.f32.mrb[0].mxu0
        %v575 = vadd.f32 %v464, %v574
        %v576 = vpop.f32.mrb[0].mxu0
        %577 = vmatprep.mubr.bf16.mxu0 0
        %578 = vmatmul.mubr.bf16.gmra.mrb[0].mxu0 %v501
        %v579 = vpop.f32.mrb[0].mxu0
        %v580 = vadd.f32 %v464, %v579
        %v581 = vpop.f32.mrb[0].mxu0
        %v582 = vpop.f32.mrb[0].mxu0
        %v583 = vadd.f32 %v464, %v582
        %v584 = vpop.f32.mrb[0].mxu0
        %585 = vmatprep.mubr.bf16.mxu0 0
        %586 = vmatmul.mubr.bf16.gmra.mrb[0].mxu0 %v504
        %v587 = vpop.f32.mrb[0].mxu0
        %v588 = vadd.f32 %v464, %v587
        %v589 = vpop.f32.mrb[0].mxu0
        %v590 = vpop.f32.mrb[0].mxu0
        %v591 = vadd.f32 %v464, %v590
        %v592 = vpop.f32.mrb[0].mxu0
        %593 = vmatprep.mubr.bf16.mxu0 0
        %594 = vmatmul.mubr.bf16.gmra.mrb[0].mxu0 %v507
        %v595 = vpop.f32.mrb[0].mxu0
        %v596 = vadd.f32 %v464, %v595
        %v597 = vpop.f32.mrb[0].mxu0
        %v598 = vpop.f32.mrb[0].mxu0
        %v599 = vadd.f32 %v464, %v598
        %v600 = vpop.f32.mrb[0].mxu0
        %601 = vmatprep.mubr.bf16.mxu0 0
        %602 = vmatmul.mubr.bf16.gmra.mrb[0].mxu0 %v510
        %v603 = vpop.f32.mrb[0].mxu0
        %v604 = vadd.f32 %v464, %v603
        %v605 = vpop.f32.mrb[0].mxu0
        %v606 = vpop.f32.mrb[0].mxu0
        %v607 = vadd.f32 %v464, %v606
        %v608 = vpop.f32.mrb[0].mxu0
        %609 = vmatprep.mubr.bf16.mxu0 0
        %610 = vmatmul.mubr.bf16.gmra.mrb[0].mxu0 %v513
        %v611 = vpop.f32.mrb[0].mxu0
        %v612 = vadd.f32 %v464, %v611
        %v613 = vpop.f32.mrb[0].mxu0
        %v614 = vpop.f32.mrb[0].mxu0
        %v615 = vadd.f32 %v464, %v614
        %v616 = vpop.f32.mrb[0].mxu0
        %617 = vmatprep.mubr.bf16.mxu0 0
        %618 = vmatmul.mubr.bf16.gmra.mrb[0].mxu0 %v516
        %v619 = vpop.f32.mrb[0].mxu0
        %v620 = vadd.f32 %v464, %v619
        %v621 = vpop.f32.mrb[0].mxu0
        %v622 = vpop.f32.mrb[0].mxu0
        %v623 = vadd.f32 %v464, %v622
        %v624 = vpop.f32.mrb[0].mxu0
        %625 = vmatprep.mubr.bf16.mxu0 0
        %626 = vmatmul.mubr.bf16.gmra.mrb[0].mxu0 %v519
        %v627 = vpop.f32.mrb[0].mxu0
        %v628 = vadd.f32 %v464, %v627
        %v629 = vpop.f32.mrb[0].mxu0
        %v630 = vpop.f32.mrb[0].mxu0
        %v631 = vpop.f32.mrb[0].mxu0
        %632 = vdwg.mxu0
        %v633 = vpack.c.bf16 %v559, %v556
        %v634 = vpack.c.bf16 %v567, %v564
        %v635 = vpack.c.bf16 %v575, %v572
        %v636 = vpack.c.bf16 %v583, %v580
        %v637 = vpack.c.bf16 %v591, %v588
        %v638 = vpack.c.bf16 %v599, %v596
        %v639 = vpack.c.bf16 %v607, %v604
        %v640 = vpack.c.bf16 %v615, %v612
        %v641 = vpack.c.bf16 %v623, %v620
        %v642 = vpack.c.bf16 %v628, %v628
        %v653 = vunpack.c.l.b16 %v633
        %v654 = vunpack.c.h.b16 %v633
        %v655 = vunpack.c.l.b16 %v634
        %v656 = vunpack.c.h.b16 %v634
        %v657 = vunpack.c.l.b16 %v635
        %v658 = vunpack.c.h.b16 %v635
        %v659 = vunpack.c.l.b16 %v636
        %v660 = vunpack.c.h.b16 %v636
        %v661 = vunpack.c.l.b16 %v637
        %v662 = vunpack.c.h.b16 %v637
        %v663 = vunpack.c.l.b16 %v638
        %v664 = vunpack.c.h.b16 %v638
        %v665 = vunpack.c.l.b16 %v639
        %v666 = vunpack.c.h.b16 %v639
        %v667 = vunpack.c.l.b16 %v640
        %v668 = vunpack.c.h.b16 %v640
        %v669 = vunpack.c.l.b16 %v641
        %v670 = vunpack.c.h.b16 %v641
        %v671 = vunpack.c.l.b16 %v642
        %v672 = vpack.c.b16 %v653, %v653
        %v673 = vpack.c.b16 %v654, %v654
        %v674 = vpack.c.b16 %v655, %v655
        %v675 = vpack.c.b16 %v656, %v656
        %v676 = vpack.c.b16 %v657, %v657
        %v677 = vpack.c.b16 %v658, %v658
        %v678 = vpack.c.b16 %v659, %v659
        %v679 = vpack.c.b16 %v660, %v660
        %v680 = vpack.c.b16 %v661, %v661
        %v681 = vpack.c.b16 %v662, %v662
        %v682 = vpack.c.b16 %v663, %v663
        %v683 = vpack.c.b16 %v664, %v664
        %v684 = vpack.c.b16 %v665, %v665
        %v685 = vpack.c.b16 %v666, %v666
        %v686 = vpack.c.b16 %v667, %v667
        %v687 = vpack.c.b16 %v668, %v668
        %v688 = vpack.c.b16 %v669, %v669
        %v689 = vpack.c.b16 %v670, %v670
        %v690 = vpack.c.b16 %v671, %v671
        %710 = vst [vmem:[%s218] sm:$0xf] %v672
        %711 = vst [vmem:[%s218 + $0x4] sm:$0xf] %v673
        %712 = vst [vmem:[%s218 + $0x8] sm:$0xf] %v674
        %713 = vst [vmem:[%s218 + $0xc] sm:$0xf] %v675
        %714 = vst [vmem:[%s218 + $0x10] sm:$0xf] %v676
        %715 = vst [vmem:[%s218 + $0x14] sm:$0xf] %v677
        %716 = vst [vmem:[%s218 + $0x18] sm:$0xf] %v678
        %717 = vst [vmem:[%s218 + $0x1c] sm:$0xf] %v679
        %718 = vst [vmem:[%s218 + $0x20] sm:$0xf] %v680
        %719 = vst [vmem:[%s218 + $0x24] sm:$0xf] %v681
        %720 = vst [vmem:[%s218 + $0x28] sm:$0xf] %v682
        %721 = vst [vmem:[%s218 + $0x2c] sm:$0xf] %v683
        %722 = vst [vmem:[%s218 + $0x30] sm:$0xf] %v684
        %723 = vst [vmem:[%s218 + $0x34] sm:$0xf] %v685
        %724 = vst [vmem:[%s218 + $0x38] sm:$0xf] %v686
        %725 = vst [vmem:[%s218 + $0x3c] sm:$0xf] %v687
        %726 = vst [vmem:[%s218 + $0x40] sm:$0xf] %v688
        %727 = vst [vmem:[%s218 + $0x44] sm:$0xf] %v689
        %728 = vst [vmem:[%s218 + $0x48] sm:$0xf] %v690
        %s729 = sand.u32 %s137, 1
        %s730 = scalar_lea.sflag [#allocation3], %s729
        %s731 = sand.u32 %s137, 1
        %s732 = smul.addr %s731, 76
        %s733 = scalar_lea.vmem [#allocation2], %s732
        // Predicated region
        $region41: #{tpu_custom_call.1} parent=39 // pred_check
          %p734 = pneg %p147
        $region42: #{tpu_custom_call.1} parent=39 // pred_check_branch
          %736 = sbr.rel (%p734) target = $region44
        $region43: #{tpu_custom_call.1} parent=39 // pred_region
          %s737 = smul.u32 19, %s19
          %s739 = ssub.s32 1216, 1216
          %740 = vsyncadd %s730, %s739
          %s741 = smul.addr %s737, 64
          %s742 = scalar_lea.hbm %s5, %s741
          %s743 = sshll.u32 %s733, 4
          %s744 = int_to_ptr.vmem [resolvable:$true] %s743
          %749 = dma.vmem_to_hbm [thread:$0]  %s744, 1216, %s742, %s730, 64, 64, 4
        $region44: #{tpu_custom_call.1} parent=39 // pred_fallthru
          _
      $region40: #{tpu_custom_call.1} parent=5 // pred_fallthru
        _
      %p750 = scmp.le.s32.totalorder 2, %s14
      // Predicated region
      $region45: #{tpu_custom_call.1} parent=5 // pred_check
        %p751 = pneg %p750
      $region46: #{tpu_custom_call.1} parent=5 // pred_check_branch
        %753 = sbr.rel (%p751) target = $region48
      $region47: #{tpu_custom_call.1} parent=5 // pred_region
        %s754 = ssub.s32 %s14, 2
        // Predicated region
        $region49: #{tpu_custom_call.1} parent=47 // pred_check
          %p755 = pneg %p153
        $region50: #{tpu_custom_call.1} parent=47 // pred_check_branch
          %757 = sbr.rel (%p755) target = $region52
        $region51: #{tpu_custom_call.1} parent=47 // pred_region
          %s758 = sand.u32 %s138, 1
          %s759 = scalar_lea.sflag [#allocation3], %s758
          %s760 = sand.u32 %s138, 1
          %s761 = smul.addr %s760, 76
          %s762 = scalar_lea.vmem [#allocation2], %s761
          %763 = dma.done %s759, 1216
        $region52: #{tpu_custom_call.1} parent=47 // pred_fallthru
          _
      $region48: #{tpu_custom_call.1} parent=5 // pred_fallthru
        _
    $region6: #{tpu_custom_call.1} parent=1 // loop_footer
      %s18 = sadd.s32 1, %s14
    $region7: #{tpu_custom_call.1} parent=1 // loop_footer_branch
      %13 = sbr.rel target = $region3
    $region8: #{tpu_custom_call.1} parent=1 // loop_exit
      _
    %764 = vsyncpa [#allocation3], 1
    %s765 = scalar_lea.sflag [#allocation3], 1
    %766 = vsyncpa %s765, 1

</llo_original>
